<compile_context>
chip_gen: v6e
topology: v6e:2x2x1
jax: 0.10.0
libtpu: 0.0.40
codegen_flags: <defaults>
</compile_context>

<pallas_src>
import functools

import jax
import jax.numpy as jnp
from jax.experimental import pallas as pl
from jax.experimental.pallas import tpu as pltpu


SUBLANE = 8     # native sublane tile
LANE = 128      # native lane tile


def _pad_up(n, m):
    return ((n + m - 1) // m) * m


# ----------------------------------------------------------------------------
# Fused kernel:
#   cls    = (tok_emb[cls_tok] + seg_emb[cls_seg]) * cls_mask    (CLS gather)
#   pooled = tanh(cls @ pool_w + pool_b)                         (BERT pooler)
#   out    = pooled @ cls_w + cls_b                              (classifier)
# Padded shapes (all f32): tok_emb [V,1,Hp], seg_emb [2,1,Hp], pool_w [Hp,Hp],
# pool_b [1,Hp], cls_w [Hp,Cp], cls_b [1,Cp], out [rows,Cp], scratch [rows,Hp].
# ----------------------------------------------------------------------------
def _fused_bert_head_kernel(
        cls_tok_ref, cls_seg_ref, cls_mask_ref,      # SMEM: [B] i32, [B] i32, [B] f32
        tok_emb_ref, seg_emb_ref,                    # VMEM: [V,1,Hp], [2,1,Hp]
        pw_ref, pb_ref, cw_ref, cb_ref,              # VMEM padded weights / biases
        o_ref,                                       # VMEM: [rows, Cp]
        cls_sc,                                      # VMEM scratch: [rows, Hp]
        *, batch):
    # 1) In-kernel CLS embedding gather (sublane-padded; padded rows stay 0,
    #    padded lanes are 0 because the embedding tables are zero-padded).
    cls_sc[...] = jnp.zeros_like(cls_sc)
    for b in range(batch):                           # static unroll (tiny batch)
        t = tok_emb_ref[cls_tok_ref[b]]              # [1, Hp]
        s = seg_emb_ref[cls_seg_ref[b]]              # [1, Hp]
        cls_sc[pl.ds(b, 1), :] = (t + s) * cls_mask_ref[b]

    # 2) Pooler: tanh(cls @ W + b). Padded lanes: tanh(0 + 0) = 0, exact.
    pooled = jnp.tanh(
        jnp.dot(cls_sc[...], pw_ref[...], preferred_element_type=jnp.float32)
        + pb_ref[...])

    # dr_rate is None (and eval-mode dropout is identity) -> no dropout.

    # 3) Classifier Linear -> lane-dense unmasked [rows, 128] store.
    o_ref[...] = (
        jnp.dot(pooled, cw_ref[...], preferred_element_type=jnp.float32)
        + cb_ref[...]).astype(o_ref.dtype)


# ----------------------------------------------------------------------------
# One-time parameter padding (hoisted out of the per-call path).
# ----------------------------------------------------------------------------
def prepare_padded_params(params):
    V, H = params["tok_emb"].shape
    C = params["cls_w_t"].shape[1]
    Hp = max(LANE, _pad_up(H, LANE))
    Cp = max(LANE, _pad_up(C, LANE))
    f32 = jnp.float32
    padded = {
        "tok_emb": jnp.zeros((V, 1, Hp), f32).at[:, 0, :H].set(params["tok_emb"]),
        "seg_emb": jnp.zeros((2, 1, Hp), f32).at[:, 0, :H].set(params["seg_emb"]),
        "pool_w": jnp.zeros((Hp, Hp), f32).at[:H, :H].set(params["pool_w"]),
        "pool_b": jnp.zeros((1, Hp), f32).at[0, :H].set(params["pool_b"]),
        "cls_w": jnp.zeros((Hp, Cp), f32).at[:H, :C].set(params["cls_w_t"]),
        "cls_b": jnp.zeros((1, Cp), f32).at[0, :C].set(params["cls_b"]),
    }
    return padded


# ----------------------------------------------------------------------------
# BERTClassifier forward (dr_rate=None -> no dropout).
# ----------------------------------------------------------------------------
@functools.partial(jax.jit, static_argnames=("num_classes",))
def bert_classifier_forward(token_ids, segment_ids, attention_mask,
                            padded_params, num_classes):
    B = token_ids.shape[0]
    Hp = padded_params["pool_w"].shape[0]
    Cp = padded_params["cls_b"].shape[1]
    rows = max(SUBLANE, _pad_up(B, SUBLANE))

    cls_tok = token_ids[:, 0].astype(jnp.int32)
    cls_seg = segment_ids[:, 0].astype(jnp.int32)
    cls_mask = attention_mask[:, 0].astype(jnp.float32)

    smem = pl.BlockSpec(memory_space=pltpu.MemorySpace.SMEM)
    vmem = pl.BlockSpec(memory_space=pltpu.MemorySpace.VMEM)

    out_p = pl.pallas_call(
        functools.partial(_fused_bert_head_kernel, batch=B),
        out_shape=jax.ShapeDtypeStruct((rows, Cp), jnp.float32),
        in_specs=[smem, smem, smem, vmem, vmem, vmem, vmem, vmem, vmem],
        out_specs=vmem,
        scratch_shapes=[pltpu.VMEM((rows, Hp), jnp.float32)],
    )(cls_tok, cls_seg, cls_mask,
      padded_params["tok_emb"], padded_params["seg_emb"],
      padded_params["pool_w"], padded_params["pool_b"],
      padded_params["cls_w"], padded_params["cls_b"])

    return out_p[:B, :num_classes]


# ----------------------------------------------------------------------------
# Deterministic parameter init (unpadded, "PyTorch-like" layout).
# ----------------------------------------------------------------------------
def init_params(key, vocab=64, hidden=32, num_classes=7):
    k = jax.random.split(key, 6)
    scale = 0.02
    return {
        "tok_emb": scale * jax.random.normal(k[0], (vocab, hidden), jnp.float32),
        "seg_emb": scale * jax.random.normal(k[1], (2, hidden), jnp.float32),
        "pool_w": scale * jax.random.normal(k[2], (hidden, hidden), jnp.float32),
        "pool_b": jnp.zeros((hidden,), jnp.float32),
        # nn.Linear(hidden, num_classes): weight is [C, H] in PyTorch; stored transposed.
        "cls_w_t": scale * jax.random.normal(k[3], (hidden, num_classes), jnp.float32),
        "cls_b": scale * jax.random.normal(k[4], (num_classes,), jnp.float32),
    }


if __name__ == "__main__":
    B, S, H, C, V = 2, 8, 32, 7, 64

    key = jax.random.PRNGKey(0)
    k_tok, k_seg, k_par = jax.random.split(key, 3)

    token_ids = jax.random.randint(k_tok, (B, S), 0, V, dtype=jnp.int32)
    segment_ids = jax.random.randint(k_seg, (B, S), 0, 2, dtype=jnp.int32)
    attention_mask = jnp.ones((B, S), dtype=jnp.float32)

    params = init_params(k_par, vocab=V, hidden=H, num_classes=C)
    padded_params = prepare_padded_params(params)      # one-time, not per call

    logits = bert_classifier_forward(token_ids, segment_ids, attention_mask,
                                     padded_params, num_classes=C)
    logits = jax.block_until_ready(logits)

    # Reference check of the fused Pallas head against plain JAX (f32).
    cls_ref = (params["tok_emb"][token_ids[:, 0]]
               + params["seg_emb"][segment_ids[:, 0]]) * attention_mask[:, 0, None]
    hi = jax.lax.Precision.HIGHEST
    pooler_ref = jnp.tanh(
        jnp.dot(cls_ref, params["pool_w"], precision=hi) + params["pool_b"])
    ref = jnp.dot(pooler_ref, params["cls_w_t"], precision=hi) + params["cls_b"]

    assert logits.shape == (B, C)
    assert jnp.allclose(logits, ref, atol=1e-4, rtol=1e-4)

    print("KERNEL_OK")
</pallas_src>

<mosaic_0001>
module attributes {stable_mosaic.version = 11 : i64} {
  func.func @_fused_bert_head_kernel(%arg0: memref<2xi32, #tpu.memory_space<smem>>, %arg1: memref<2xi32, #tpu.memory_space<smem>>, %arg2: memref<2xf32, #tpu.memory_space<smem>>, %arg3: memref<64x1x128xf32, #tpu.memory_space<vmem>>, %arg4: memref<2x1x128xf32, #tpu.memory_space<vmem>>, %arg5: memref<128x128xf32, #tpu.memory_space<vmem>>, %arg6: memref<1x128xf32, #tpu.memory_space<vmem>>, %arg7: memref<128x128xf32, #tpu.memory_space<vmem>>, %arg8: memref<1x128xf32, #tpu.memory_space<vmem>>, %arg9: memref<8x128xf32, #tpu.memory_space<vmem>>, %arg10: memref<8x128xf32, #tpu.memory_space<vmem>>) attributes {dimension_semantics = [], scalar_prefetch = 0 : i64, scratch_operands = 1 : i64, tpu.core_type = #tpu.core_type<tc>} {
    %cst = arith.constant 0.000000e+00 : f32
    %0 = vector.broadcast %cst : f32 to vector<8x128xf32>
    %c0 = arith.constant 0 : index
    %c0_0 = arith.constant 0 : index
    %1 = vector.load %arg10[%c0, %c0_0] : memref<8x128xf32, #tpu.memory_space<vmem>>, vector<8x128xf32>
    tpu.vector_store %arg10[%c0, %c0_0], %0 {strides = array<i32>} : memref<8x128xf32, #tpu.memory_space<vmem>>, vector<8x128xf32>,
    %c0_1 = arith.constant 0 : index
    %2 = memref.load %arg0[%c0_1] : memref<2xi32, #tpu.memory_space<smem>>
    %3 = arith.index_cast %2 : i32 to index
    %c0_2 = arith.constant 0 : index
    %c0_3 = arith.constant 0 : index
    %4 = vector.load %arg3[%3, %c0_2, %c0_3] : memref<64x1x128xf32, #tpu.memory_space<vmem>>, vector<1x1x128xf32>
    %5 = vector.shape_cast %4 : vector<1x1x128xf32> to vector<1x128xf32>
    %c0_4 = arith.constant 0 : index
    %6 = memref.load %arg1[%c0_4] : memref<2xi32, #tpu.memory_space<smem>>
    %7 = arith.index_cast %6 : i32 to index
    %c0_5 = arith.constant 0 : index
    %c0_6 = arith.constant 0 : index
    %8 = vector.load %arg4[%7, %c0_5, %c0_6] : memref<2x1x128xf32, #tpu.memory_space<vmem>>, vector<1x1x128xf32>
    %9 = vector.shape_cast %8 : vector<1x1x128xf32> to vector<1x128xf32>
    %10 = arith.addf %5, %9 : vector<1x128xf32>
    %c0_7 = arith.constant 0 : index
    %11 = memref.load %arg2[%c0_7] : memref<2xf32, #tpu.memory_space<smem>>
    %12 = vector.broadcast %11 : f32 to vector<1x128xf32>
    %13 = arith.mulf %10, %12 : vector<1x128xf32>
    %c0_8 = arith.constant 0 : index
    %c0_9 = arith.constant 0 : index
    %14 = vector.load %arg10[%c0_8, %c0_9] : memref<8x128xf32, #tpu.memory_space<vmem>>, vector<1x128xf32>
    tpu.vector_store %arg10[%c0_8, %c0_9], %13 {strides = array<i32>} : memref<8x128xf32, #tpu.memory_space<vmem>>, vector<1x128xf32>,
    %c1 = arith.constant 1 : index
    %15 = memref.load %arg0[%c1] : memref<2xi32, #tpu.memory_space<smem>>
    %16 = arith.index_cast %15 : i32 to index
    %c0_10 = arith.constant 0 : index
    %c0_11 = arith.constant 0 : index
    %17 = vector.load %arg3[%16, %c0_10, %c0_11] : memref<64x1x128xf32, #tpu.memory_space<vmem>>, vector<1x1x128xf32>
    %18 = vector.shape_cast %17 : vector<1x1x128xf32> to vector<1x128xf32>
    %c1_12 = arith.constant 1 : index
    %19 = memref.load %arg1[%c1_12] : memref<2xi32, #tpu.memory_space<smem>>
    %20 = arith.index_cast %19 : i32 to index
    %c0_13 = arith.constant 0 : index
    %c0_14 = arith.constant 0 : index
    %21 = vector.load %arg4[%20, %c0_13, %c0_14] : memref<2x1x128xf32, #tpu.memory_space<vmem>>, vector<1x1x128xf32>
    %22 = vector.shape_cast %21 : vector<1x1x128xf32> to vector<1x128xf32>
    %23 = arith.addf %18, %22 : vector<1x128xf32>
    %c1_15 = arith.constant 1 : index
    %24 = memref.load %arg2[%c1_15] : memref<2xf32, #tpu.memory_space<smem>>
    %25 = vector.broadcast %24 : f32 to vector<1x128xf32>
    %26 = arith.mulf %23, %25 : vector<1x128xf32>
    %c1_16 = arith.constant 1 : index
    %c0_17 = arith.constant 0 : index
    %27 = vector.load %arg10[%c1_16, %c0_17] : memref<8x128xf32, #tpu.memory_space<vmem>>, vector<1x128xf32>
    tpu.vector_store %arg10[%c1_16, %c0_17], %26 {strides = array<i32>} : memref<8x128xf32, #tpu.memory_space<vmem>>, vector<1x128xf32>,
    %c0_18 = arith.constant 0 : index
    %c0_19 = arith.constant 0 : index
    %28 = vector.load %arg10[%c0_18, %c0_19] : memref<8x128xf32, #tpu.memory_space<vmem>>, vector<8x128xf32>
    %c0_20 = arith.constant 0 : index
    %c0_21 = arith.constant 0 : index
    %29 = vector.load %arg5[%c0_20, %c0_21] : memref<128x128xf32, #tpu.memory_space<vmem>>, vector<128x128xf32>
    %cst_22 = arith.constant dense<0.000000e+00> : vector<8x128xf32>
    %30 = tpu.matmul %28, %29, %cst_22 {dimension_numbers = #tpu.dot_dimension_numbers<[1], [0], [0], [1], [0, 0, 1, 1], [], []>} : vector<8x128xf32>, vector<128x128xf32>, vector<8x128xf32> -> vector<8x128xf32>
    %c0_23 = arith.constant 0 : index
    %c0_24 = arith.constant 0 : index
    %31 = vector.load %arg6[%c0_23, %c0_24] : memref<1x128xf32, #tpu.memory_space<vmem>>, vector<1x128xf32>
    %32 = vector.broadcast %31 : vector<1x128xf32> to vector<8x128xf32>
    %33 = arith.addf %30, %32 : vector<8x128xf32>
    %34 = math.tanh %33 : vector<8x128xf32>
    %c0_25 = arith.constant 0 : index
    %c0_26 = arith.constant 0 : index
    %35 = vector.load %arg7[%c0_25, %c0_26] : memref<128x128xf32, #tpu.memory_space<vmem>>, vector<128x128xf32>
    %cst_27 = arith.constant dense<0.000000e+00> : vector<8x128xf32>
    %36 = tpu.matmul %34, %35, %cst_27 {dimension_numbers = #tpu.dot_dimension_numbers<[1], [0], [0], [1], [0, 0, 1, 1], [], []>} : vector<8x128xf32>, vector<128x128xf32>, vector<8x128xf32> -> vector<8x128xf32>
    %c0_28 = arith.constant 0 : index
    %c0_29 = arith.constant 0 : index
    %37 = vector.load %arg8[%c0_28, %c0_29] : memref<1x128xf32, #tpu.memory_space<vmem>>, vector<1x128xf32>
    %38 = vector.broadcast %37 : vector<1x128xf32> to vector<8x128xf32>
    %39 = arith.addf %36, %38 : vector<8x128xf32>
    %c0_30 = arith.constant 0 : index
    %c0_31 = arith.constant 0 : index
    %40 = vector.load %arg9[%c0_30, %c0_31] : memref<8x128xf32, #tpu.memory_space<vmem>>, vector<8x128xf32>
    tpu.vector_store %arg9[%c0_30, %c0_31], %39 {strides = array<i32>} : memref<8x128xf32, #tpu.memory_space<vmem>>, vector<8x128xf32>,
    return
  }
}

</mosaic_0001>

<llo_original>
// kernel: bert_classifier_forward.1
$region0: #{bert_classifier_forward.1}
  #allocation0 [shape = 'u32[]', space=smem, size = 0x4, offset = 0x4, fixed_abs, tag = 'smem constant byte address 0x4 - core index']
  #allocation1 [shape = 'u32[144,128]{1,0:T(1,128)}', space=vmem, size = 0x12000, scoped, tag = 'internal scratch']
  #allocation2 [shape = 'f32[8,128]{1,0:T(8,128)}', space=vmem, size = 0x1000, scoped, tag = 'scratch operand']
  %s0 = inlined_call_operand.vmem [shape: s32[2], index: 0, kind: input, shape index: {}]
  %s1 = inlined_call_operand.vmem [shape: s32[2], index: 1, kind: input, shape index: {}]
  %s2 = inlined_call_operand.vmem [shape: f32[2], index: 2, kind: input, shape index: {}]
  %s3 = inlined_call_operand.hbm [shape: f32[64,1,128], index: 3, kind: input, shape index: {}]
  %s4 = inlined_call_operand.vmem [shape: f32[2,1,128], index: 4, kind: input, shape index: {}]
  %s5 = inlined_call_operand.hbm [shape: f32[128,128], index: 5, kind: input, shape index: {}]
  %s6 = inlined_call_operand.vmem [shape: f32[1,128], index: 6, kind: input, shape index: {}]
  %s7 = inlined_call_operand.hbm [shape: f32[128,128], index: 7, kind: input, shape index: {}]
  %s8 = inlined_call_operand.vmem [shape: f32[1,128], index: 8, kind: input, shape index: {}]
  %s9 = inlined_call_operand.vmem [shape: f32[8,128], index: 9, kind: output, shape index: {}]
  %s10 = sld [smem:[#allocation0]]
  $region70: #{bert_classifier_forward.1} parent=0
    _
  %s12 = ssub.s32 1, %s10
  %s13 = scalar_select 0, %s12, %s10
  $region1: #{bert_classifier_forward.1} parent=0
    #allocation3 [shape = 'u8[512]{0}', space=smem, size = 0x200, scoped, tag = 'input window, operand 0, single buffered']
    #allocation4 [shape = 's32[1]{0}', space=sflag, size = 0x4, scoped, tag = 'scoped memory for bert_classifier_forward.1']
    #allocation5 [shape = 's32[1]{0}', space=sflag, size = 0x4, scoped, tag = 'scoped memory for bert_classifier_forward.1']
    #allocation6 [shape = 'u8[512]{0}', space=smem, size = 0x200, scoped, tag = 'input window, operand 1, single buffered']
    #allocation7 [shape = 's32[1]{0}', space=sflag, size = 0x4, scoped, tag = 'scoped memory for bert_classifier_forward.1']
    #allocation8 [shape = 'u8[512]{0}', space=smem, size = 0x200, scoped, tag = 'input window, operand 2, single buffered']
    #allocation9 [shape = 'u8[32768]{0}', space=vmem, size = 0x8000, scoped, tag = 'input window, operand 3, single buffered']
    #allocation10 [shape = 'u8[65536]{0}', space=vmem, size = 0x10000, scoped, tag = 'input window, operand 5, single buffered']
    #allocation11 [shape = 's32[1]{0}', space=sflag, size = 0x4, scoped, tag = 'scoped memory for bert_classifier_forward.1']
    #allocation12 [shape = 'u8[65536]{0}', space=vmem, size = 0x10000, scoped, tag = 'input window, operand 7, single buffered']
    %14 = vsyncpa [#allocation5], 0
    %15 = vsyncpa [#allocation7], 0
    %16 = vsyncpa [#allocation4], 0
    %17 = vsyncpa [#allocation11], 0
    // Predicated region
    $region2: #{bert_classifier_forward.1} parent=1 // pred_check
      _
    $region3: #{bert_classifier_forward.1} parent=1 // pred_check_branch
      %19 = sbr.rel (0) target = $region5
    $region4: #{bert_classifier_forward.1} parent=1 // pred_region
      %s21 = ssub.s32 16, 16
      %22 = vsyncadd [#allocation5], %s21
      %s24 = sshll.u32 %s0, 4
      %s25 = int_to_ptr.vmem [resolvable:$true] %s24
      %27 = dma.vmem_to_smem %s25, 16, [#allocation3], [#allocation5]
    $region5: #{bert_classifier_forward.1} parent=1 // pred_fallthru
      _
    // Predicated region
    $region6: #{bert_classifier_forward.1} parent=1 // pred_check
      _
    $region7: #{bert_classifier_forward.1} parent=1 // pred_check_branch
      %29 = sbr.rel (0) target = $region9
    $region8: #{bert_classifier_forward.1} parent=1 // pred_region
      %s31 = ssub.s32 16, 16
      %32 = vsyncadd [#allocation7], %s31
      %s34 = sshll.u32 %s1, 4
      %s35 = int_to_ptr.vmem [resolvable:$true] %s34
      %37 = dma.vmem_to_smem %s35, 16, [#allocation6], [#allocation7]
    $region9: #{bert_classifier_forward.1} parent=1 // pred_fallthru
      _
    // Predicated region
    $region10: #{bert_classifier_forward.1} parent=1 // pred_check
      _
    $region11: #{bert_classifier_forward.1} parent=1 // pred_check_branch
      %39 = sbr.rel (0) target = $region13
    $region12: #{bert_classifier_forward.1} parent=1 // pred_region
      %s41 = ssub.s32 16, 16
      %42 = vsyncadd [#allocation7], %s41
      %s44 = sshll.u32 %s2, 4
      %s45 = int_to_ptr.vmem [resolvable:$true] %s44
      %47 = dma.vmem_to_smem %s45, 16, [#allocation8], [#allocation7]
    $region13: #{bert_classifier_forward.1} parent=1 // pred_fallthru
      _
    // Predicated region
    $region14: #{bert_classifier_forward.1} parent=1 // pred_check
      _
    $region15: #{bert_classifier_forward.1} parent=1 // pred_check_branch
      %49 = sbr.rel (0) target = $region17
    $region16: #{bert_classifier_forward.1} parent=1 // pred_region
      %s51 = ssub.s32 1024, 1024
      %52 = vsyncadd [#allocation4], %s51
      %s53 = sshll.u32 [#allocation9], 4
      %s54 = int_to_ptr.vmem [resolvable:$true] %s53
      %59 = dma.hbm_to_vmem [thread:$0]  %s3, 1024, %s54, [#allocation4], 16, 16, 1
    $region17: #{bert_classifier_forward.1} parent=1 // pred_fallthru
      _
    // Predicated region
    $region18: #{bert_classifier_forward.1} parent=1 // pred_check
      _
    $region19: #{bert_classifier_forward.1} parent=1 // pred_check_branch
      %61 = sbr.rel (0) target = $region21
    $region20: #{bert_classifier_forward.1} parent=1 // pred_region
      _
    $region21: #{bert_classifier_forward.1} parent=1 // pred_fallthru
      _
    // Predicated region
    $region22: #{bert_classifier_forward.1} parent=1 // pred_check
      _
    $region23: #{bert_classifier_forward.1} parent=1 // pred_check_branch
      %63 = sbr.rel (0) target = $region25
    $region24: #{bert_classifier_forward.1} parent=1 // pred_region
      %s65 = ssub.s32 2048, 2048
      %66 = vsyncadd [#allocation11], %s65
      %s67 = sshll.u32 [#allocation10], 4
      %s68 = int_to_ptr.vmem [resolvable:$true] %s67
      %73 = dma.hbm_to_vmem [thread:$0]  %s5, 2048, %s68, [#allocation11], 128, 128, 8
    $region25: #{bert_classifier_forward.1} parent=1 // pred_fallthru
      _
    // Predicated region
    $region26: #{bert_classifier_forward.1} parent=1 // pred_check
      _
    $region27: #{bert_classifier_forward.1} parent=1 // pred_check_branch
      %75 = sbr.rel (0) target = $region29
    $region28: #{bert_classifier_forward.1} parent=1 // pred_region
      _
    $region29: #{bert_classifier_forward.1} parent=1 // pred_fallthru
      _
    // Predicated region
    $region30: #{bert_classifier_forward.1} parent=1 // pred_check
      _
    $region31: #{bert_classifier_forward.1} parent=1 // pred_check_branch
      %77 = sbr.rel (0) target = $region33
    $region32: #{bert_classifier_forward.1} parent=1 // pred_region
      %s79 = ssub.s32 2048, 2048
      %80 = vsyncadd [#allocation11], %s79
      %s81 = sshll.u32 [#allocation12], 4
      %s82 = int_to_ptr.vmem [resolvable:$true] %s81
      %87 = dma.hbm_to_vmem [thread:$0]  %s7, 2048, %s82, [#allocation11], 128, 128, 8
    $region33: #{bert_classifier_forward.1} parent=1 // pred_fallthru
      _
    // Predicated region
    $region34: #{bert_classifier_forward.1} parent=1 // pred_check
      _
    $region35: #{bert_classifier_forward.1} parent=1 // pred_check_branch
      %89 = sbr.rel (0) target = $region37
    $region36: #{bert_classifier_forward.1} parent=1 // pred_region
      _
    $region37: #{bert_classifier_forward.1} parent=1 // pred_fallthru
      _
    // Predicated region
    $region38: #{bert_classifier_forward.1} parent=1 // pred_check
      _
    $region39: #{bert_classifier_forward.1} parent=1 // pred_check_branch
      %91 = sbr.rel (0) target = $region41
    $region40: #{bert_classifier_forward.1} parent=1 // pred_region
      %92 = dma.done [#allocation5], 16
    $region41: #{bert_classifier_forward.1} parent=1 // pred_fallthru
      _
    // Predicated region
    $region42: #{bert_classifier_forward.1} parent=1 // pred_check
      _
    $region43: #{bert_classifier_forward.1} parent=1 // pred_check_branch
      %94 = sbr.rel (0) target = $region45
    $region44: #{bert_classifier_forward.1} parent=1 // pred_region
      %95 = dma.done [#allocation7], 16
    $region45: #{bert_classifier_forward.1} parent=1 // pred_fallthru
      _
    // Predicated region
    $region46: #{bert_classifier_forward.1} parent=1 // pred_check
      _
    $region47: #{bert_classifier_forward.1} parent=1 // pred_check_branch
      %97 = sbr.rel (0) target = $region49
    $region48: #{bert_classifier_forward.1} parent=1 // pred_region
      %98 = dma.done [#allocation7], 16
    $region49: #{bert_classifier_forward.1} parent=1 // pred_fallthru
      _
    // Predicated region
    $region50: #{bert_classifier_forward.1} parent=1 // pred_check
      _
    $region51: #{bert_classifier_forward.1} parent=1 // pred_check_branch
      %100 = sbr.rel (0) target = $region53
    $region52: #{bert_classifier_forward.1} parent=1 // pred_region
      %101 = dma.done [#allocation4], 1024
    $region53: #{bert_classifier_forward.1} parent=1 // pred_fallthru
      _
    // Predicated region
    $region54: #{bert_classifier_forward.1} parent=1 // pred_check
      _
    $region55: #{bert_classifier_forward.1} parent=1 // pred_check_branch
      %103 = sbr.rel (0) target = $region57
    $region56: #{bert_classifier_forward.1} parent=1 // pred_region
      %104 = dma.done [#allocation11], 2048
    $region57: #{bert_classifier_forward.1} parent=1 // pred_fallthru
      _
    // Predicated region
    $region58: #{bert_classifier_forward.1} parent=1 // pred_check
      _
    $region59: #{bert_classifier_forward.1} parent=1 // pred_check_branch
      %106 = sbr.rel (0) target = $region61
    $region60: #{bert_classifier_forward.1} parent=1 // pred_region
      %107 = dma.done [#allocation11], 2048
    $region61: #{bert_classifier_forward.1} parent=1 // pred_fallthru
      _
    %108 = sfence
    %109 = vst [vmem:[#allocation2] sm:$0xff] 0.0
    %s110 = sld [smem:[#allocation3]]
    %s111 = scalar_lea.vmem [#allocation9], %s110
    %v112 = vld [vmem:[%s111] sm:$0x1]
    %s113 = sld [smem:[#allocation6]]
    %s114 = scalar_lea.vmem %s4, %s113
    %v115 = vld [vmem:[%s114] sm:$0x1]
    %v116 = vadd.f32 %v112, %v115
    %s117 = sld [smem:[#allocation8]]
    %v118 = vstv %s117
    %v119 = vmul.f32 %v116, %v118
    %120 = vst [vmem:[#allocation2] sm:$0x1] %v119
    %s121 = sld [smem:[#allocation3 + $0x1]]
    %s122 = scalar_lea.vmem [#allocation9], %s121
    %v123 = vld [vmem:[%s122] sm:$0x1]
    %s124 = sld [smem:[#allocation6 + $0x1]]
    %s125 = scalar_lea.vmem %s4, %s124
    %v126 = vld [vmem:[%s125] sm:$0x1]
    %v127 = vadd.f32 %v123, %v126
    %s128 = sld [smem:[#allocation8 + $0x1]]
    %v129 = vstv %s128
    %v130 = vmul.f32 %v127, %v129
    %131 = vst [vmem:[#allocation2 + $0x1] sm:$0x1] %v130
    %v132 = vld [vmem:[#allocation2] sm:$0xff]
    %v133 = vld [vmem:[#allocation10] sm:$0xff]
    %v134 = vld [vmem:[#allocation10 + $0x8] sm:$0xff]
    %v135 = vld [vmem:[#allocation10 + $0x10] sm:$0xff]
    %v136 = vld [vmem:[#allocation10 + $0x18] sm:$0xff]
    %v137 = vld [vmem:[#allocation10 + $0x20] sm:$0xff]
    %v138 = vld [vmem:[#allocation10 + $0x28] sm:$0xff]
    %v139 = vld [vmem:[#allocation10 + $0x30] sm:$0xff]
    %v140 = vld [vmem:[#allocation10 + $0x38] sm:$0xff]
    %v141 = vld [vmem:[#allocation10 + $0x40] sm:$0xff]
    %v142 = vld [vmem:[#allocation10 + $0x48] sm:$0xff]
    %v143 = vld [vmem:[#allocation10 + $0x50] sm:$0xff]
    %v144 = vld [vmem:[#allocation10 + $0x58] sm:$0xff]
    %v145 = vld [vmem:[#allocation10 + $0x60] sm:$0xff]
    %v146 = vld [vmem:[#allocation10 + $0x68] sm:$0xff]
    %v147 = vld [vmem:[#allocation10 + $0x70] sm:$0xff]
    %v148 = vld [vmem:[#allocation10 + $0x78] sm:$0xff]
    %v149 = vld [vmem:[%s6] sm:$0x1]
    %v151 = vlaneseq
    %v152 = vshrl.u32 %v151, 7
    %v153 = vsub.s32 0, %v152
    %v154 = vrot.slane %v149, %v153
    %156 = vmatprep.subr.mxu0 0.0
    %157 = vmatpush1.msra.mxu0 %v148
    %158 = vmatprep.subr.mxu0 0.0
    %159 = vmatpush1.msra.mxu0 %v147
    %160 = vmatprep.subr.mxu0 0.0
    %161 = vmatpush1.msra.mxu0 %v146
    %162 = vmatprep.subr.mxu0 0.0
    %163 = vmatpush1.msra.mxu0 %v145
    %164 = vmatprep.subr.mxu0 0.0
    %165 = vmatpush1.msra.mxu0 %v144
    %166 = vmatprep.subr.mxu0 0.0
    %167 = vmatpush1.msra.mxu0 %v143
    %168 = vmatprep.subr.mxu0 0.0
    %169 = vmatpush1.msra.mxu0 %v142
    %170 = vmatprep.subr.mxu0 0.0
    %171 = vmatpush1.msra.mxu0 %v141
    %172 = vmatprep.subr.mxu0 0.0
    %173 = vmatpush1.msra.mxu0 %v140
    %174 = vmatprep.subr.mxu0 0.0
    %175 = vmatpush1.msra.mxu0 %v139
    %176 = vmatprep.subr.mxu0 0.0
    %177 = vmatpush1.msra.mxu0 %v138
    %178 = vmatprep.subr.mxu0 0.0
    %179 = vmatpush1.msra.mxu0 %v137
    %180 = vmatprep.subr.mxu0 0.0
    %181 = vmatpush1.msra.mxu0 %v136
    %182 = vmatprep.subr.mxu0 0.0
    %183 = vmatpush1.msra.mxu0 %v135
    %184 = vmatprep.subr.mxu0 0.0
    %185 = vmatpush1.msra.mxu0 %v134
    %186 = vmatprep.subr.mxu0 0.0
    %187 = vmatpush1.msra.mxu0 %v133
    %188 = vmatprep.subr.mxu0 0.0
    %189 = vmatpush2.msra.mxu0 0.0
    %190 = vmatprep.subr.mxu0 0.0
    %191 = vmatpush2.msra.mxu0 0.0
    %192 = vmatprep.subr.mxu0 0.0
    %193 = vmatpush2.msra.mxu0 0.0
    %194 = vmatprep.subr.mxu0 0.0
    %195 = vmatpush2.msra.mxu0 0.0
    %196 = vmatprep.subr.mxu0 0.0
    %197 = vmatpush2.msra.mxu0 0.0
    %198 = vmatprep.subr.mxu0 0.0
    %199 = vmatpush2.msra.mxu0 0.0
    %200 = vmatprep.subr.mxu0 0.0
    %201 = vmatpush2.msra.mxu0 0.0
    %202 = vmatprep.subr.mxu0 0.0
    %203 = vmatpush2.msra.mxu0 0.0
    %204 = vmatprep.subr.mxu0 0.0
    %205 = vmatpush2.msra.mxu0 0.0
    %206 = vmatprep.subr.mxu0 0.0
    %207 = vmatpush2.msra.mxu0 0.0
    %208 = vmatprep.subr.mxu0 0.0
    %209 = vmatpush2.msra.mxu0 0.0
    %210 = vmatprep.subr.mxu0 0.0
    %211 = vmatpush2.msra.mxu0 0.0
    %212 = vmatprep.subr.mxu0 0.0
    %213 = vmatpush2.msra.mxu0 0.0
    %214 = vmatprep.subr.mxu0 0.0
    %215 = vmatpush2.msra.mxu0 0.0
    %216 = vmatprep.subr.mxu0 0.0
    %217 = vmatpush2.msra.mxu0 0.0
    %218 = vmatprep.subr.mxu0 0.0
    %219 = vmatpush2.msra.mxu0 0.0
    %220 = vmatprep.mubr.f32.mxu0 0.0
    %221 = vmatmul.mubr.f32.gmra.mxu0 %v132
    %v222 = vpop.f32.mrf.mxu0
    %v223 = vadd.f32 %v154, %v222
    %v224 = vpop.f32.mrf.mxu0
    %225 = vdwg.mxu0
    %v226 = vtanh.pop %v223
    %v227 = vld [vmem:[#allocation12] sm:$0xff]
    %v228 = vld [vmem:[#allocation12 + $0x8] sm:$0xff]
    %v229 = vld [vmem:[#allocation12 + $0x10] sm:$0xff]
    %v230 = vld [vmem:[#allocation12 + $0x18] sm:$0xff]
    %v231 = vld [vmem:[#allocation12 + $0x20] sm:$0xff]
    %v232 = vld [vmem:[#allocation12 + $0x28] sm:$0xff]
    %v233 = vld [vmem:[#allocation12 + $0x30] sm:$0xff]
    %v234 = vld [vmem:[#allocation12 + $0x38] sm:$0xff]
    %v235 = vld [vmem:[#allocation12 + $0x40] sm:$0xff]
    %v236 = vld [vmem:[#allocation12 + $0x48] sm:$0xff]
    %v237 = vld [vmem:[#allocation12 + $0x50] sm:$0xff]
    %v238 = vld [vmem:[#allocation12 + $0x58] sm:$0xff]
    %v239 = vld [vmem:[#allocation12 + $0x60] sm:$0xff]
    %v240 = vld [vmem:[#allocation12 + $0x68] sm:$0xff]
    %v241 = vld [vmem:[#allocation12 + $0x70] sm:$0xff]
    %v242 = vld [vmem:[#allocation12 + $0x78] sm:$0xff]
    %v243 = vld [vmem:[%s8] sm:$0x1]
    %v245 = vlaneseq
    %v246 = vshrl.u32 %v245, 7
    %v247 = vsub.s32 0, %v246
    %v248 = vrot.slane %v243, %v247
    %250 = vmatprep.subr.mxu0 0.0
    %251 = vmatpush1.msra.mxu0 %v242
    %252 = vmatprep.subr.mxu0 0.0
    %253 = vmatpush1.msra.mxu0 %v241
    %254 = vmatprep.subr.mxu0 0.0
    %255 = vmatpush1.msra.mxu0 %v240
    %256 = vmatprep.subr.mxu0 0.0
    %257 = vmatpush1.msra.mxu0 %v239
    %258 = vmatprep.subr.mxu0 0.0
    %259 = vmatpush1.msra.mxu0 %v238
    %260 = vmatprep.subr.mxu0 0.0
    %261 = vmatpush1.msra.mxu0 %v237
    %262 = vmatprep.subr.mxu0 0.0
    %263 = vmatpush1.msra.mxu0 %v236
    %264 = vmatprep.subr.mxu0 0.0
    %265 = vmatpush1.msra.mxu0 %v235
    %266 = vmatprep.subr.mxu0 0.0
    %267 = vmatpush1.msra.mxu0 %v234
    %268 = vmatprep.subr.mxu0 0.0
    %269 = vmatpush1.msra.mxu0 %v233
    %270 = vmatprep.subr.mxu0 0.0
    %271 = vmatpush1.msra.mxu0 %v232
    %272 = vmatprep.subr.mxu0 0.0
    %273 = vmatpush1.msra.mxu0 %v231
    %274 = vmatprep.subr.mxu0 0.0
    %275 = vmatpush1.msra.mxu0 %v230
    %276 = vmatprep.subr.mxu0 0.0
    %277 = vmatpush1.msra.mxu0 %v229
    %278 = vmatprep.subr.mxu0 0.0
    %279 = vmatpush1.msra.mxu0 %v228
    %280 = vmatprep.subr.mxu0 0.0
    %281 = vmatpush1.msra.mxu0 %v227
    %282 = vmatprep.subr.mxu0 0.0
    %283 = vmatpush2.msra.mxu0 0.0
    %284 = vmatprep.subr.mxu0 0.0
    %285 = vmatpush2.msra.mxu0 0.0
    %286 = vmatprep.subr.mxu0 0.0
    %287 = vmatpush2.msra.mxu0 0.0
    %288 = vmatprep.subr.mxu0 0.0
    %289 = vmatpush2.msra.mxu0 0.0
    %290 = vmatprep.subr.mxu0 0.0
    %291 = vmatpush2.msra.mxu0 0.0
    %292 = vmatprep.subr.mxu0 0.0
    %293 = vmatpush2.msra.mxu0 0.0
    %294 = vmatprep.subr.mxu0 0.0
    %295 = vmatpush2.msra.mxu0 0.0
    %296 = vmatprep.subr.mxu0 0.0
    %297 = vmatpush2.msra.mxu0 0.0
    %298 = vmatprep.subr.mxu0 0.0
    %299 = vmatpush2.msra.mxu0 0.0
    %300 = vmatprep.subr.mxu0 0.0
    %301 = vmatpush2.msra.mxu0 0.0
    %302 = vmatprep.subr.mxu0 0.0
    %303 = vmatpush2.msra.mxu0 0.0
    %304 = vmatprep.subr.mxu0 0.0
    %305 = vmatpush2.msra.mxu0 0.0
    %306 = vmatprep.subr.mxu0 0.0
    %307 = vmatpush2.msra.mxu0 0.0
    %308 = vmatprep.subr.mxu0 0.0
    %309 = vmatpush2.msra.mxu0 0.0
    %310 = vmatprep.subr.mxu0 0.0
    %311 = vmatpush2.msra.mxu0 0.0
    %312 = vmatprep.subr.mxu0 0.0
    %313 = vmatpush2.msra.mxu0 0.0
    %314 = vmatprep.mubr.f32.mxu0 0.0
    %315 = vmatmul.mubr.f32.gmra.mxu0 %v226
    %v316 = vpop.f32.mrf.mxu0
    %v317 = vadd.f32 %v248, %v316
    %v318 = vpop.f32.mrf.mxu0
    %319 = vdwg.mxu0
    %320 = vst [vmem:[%s9] sm:$0xff] %v317
    // Predicated region
    $region62: #{bert_classifier_forward.1} parent=1 // pred_check
      _
    $region63: #{bert_classifier_forward.1} parent=1 // pred_check_branch
      %322 = sbr.rel (0) target = $region65
    $region64: #{bert_classifier_forward.1} parent=1 // pred_region
      _
    $region65: #{bert_classifier_forward.1} parent=1 // pred_fallthru
      _
    // Predicated region
    $region66: #{bert_classifier_forward.1} parent=1 // pred_check
      _
    $region67: #{bert_classifier_forward.1} parent=1 // pred_check_branch
      %324 = sbr.rel (0) target = $region69
    $region68: #{bert_classifier_forward.1} parent=1 // pred_region
      _
    $region69: #{bert_classifier_forward.1} parent=1 // pred_fallthru
      _
    %325 = vsyncpa [#allocation4], 1
    %326 = vsyncpa [#allocation11], 1
    %327 = vsyncpa [#allocation5], 1
    %328 = vsyncpa [#allocation7], 1

</llo_original>
